<compile_context>
chip_gen: v7x
topology: tpu7x:2x2x1
jax: 0.10.0
libtpu: 0.0.40
codegen_flags: <defaults>
</compile_context>

<pallas_src>
import functools

import jax
import jax.numpy as jnp
from jax.experimental import pallas as pl
from jax.experimental.pallas import tpu as pltpu

_LANES = 128
_FG_CHANNEL = 1  # the module hard-codes channel 1 as foreground


def _dice_partial_kernel(x_ref, t_ref, out_ref, *, n_channels, apply_ignore,
                         ignore_value, need_tail_mask, valid_size, tile_rows,
                         lanes):
    """One (batch, spatial-tile) grid point -> partial [num, den] in SMEM.

    x_ref:   (1, C, tS, L) logits tile (VMEM)
    t_ref:   (1, tS, L)    targets tile (VMEM, caller dtype, cast in-kernel)
    out_ref: (1, 1, 2)     per-(n, s) partials [sum(p_fg*t), sum(p_fg)+sum(t)]
    """
    t = t_ref[0].astype(jnp.float32)                       # (tS, L)
    x_fg = x_ref[0, _FG_CHANNEL].astype(jnp.float32)       # foreground logit

    # p_fg = softmax(x)[fg] = 1 / sum_c exp(x_c - x_fg); the c == fg term is
    # exactly 1 so it never hits the EUP.  Clamp the exponent to avoid inf.
    denom = jnp.ones_like(x_fg)
    for c in range(n_channels):
        if c == _FG_CHANNEL:
            continue
        d = x_ref[0, c].astype(jnp.float32) - x_fg
        denom = denom + jnp.exp(jnp.minimum(d, 80.0))
    p_fg = pl.reciprocal(denom, approx=False)

    if apply_ignore:
        # Exact for integer-valued labels (same semantics as the torch module).
        keep = (t != ignore_value).astype(jnp.float32)
        p_fg = p_fg * keep
        t = t * keep

    if need_tail_mask:
        s_idx = pl.program_id(1)
        row = jax.lax.broadcasted_iota(jnp.int32, (tile_rows, lanes), 0)
        lane = jax.lax.broadcasted_iota(jnp.int32, (tile_rows, lanes), 1)
        flat = s_idx * (tile_rows * lanes) + row * lanes + lane
        valid = (flat < valid_size).astype(jnp.float32)
        p_fg = p_fg * valid
        t = t * valid

    out_ref[0, 0, 0] = jnp.sum(p_fg * t)
    out_ref[0, 0, 1] = jnp.sum(p_fg) + jnp.sum(t)


def _choose_tiling(hw, n_channels, x_itemsize, t_itemsize,
                   budget_bytes=12 << 20, max_rows=1024, lanes=_LANES):
    """Pick (padded rows S, tile rows tS, n_steps) under a VMEM budget."""
    rows_needed = -(-hw // lanes)                          # ceil(HW / 128)
    # Per-row VMEM: double-buffered input tiles + ~(C+4) f32 temporaries.
    per_row = 2 * (n_channels * x_itemsize + t_itemsize) * lanes \
        + (n_channels + 4) * lanes * 4
    cap = max(8, (min(max_rows, budget_bytes // per_row) // 8) * 8)
    if rows_needed <= cap:
        tile_rows = max(8, (-(-rows_needed // 8)) * 8)
        n_steps = 1
    else:
        tile_rows = cap
        n_steps = -(-rows_needed // tile_rows)
    return n_steps * tile_rows, tile_rows, n_steps


def dice_loss(inputs, targets, smooth=1.0, reduction="mean", ignore_index=-100):
    """inputs: (N, C, H, W) logits; targets: (N, H, W) labels (any real dtype)."""
    N, C, H, W = inputs.shape
    assert C >= 2, "Dice_Loss uses softmax channel 1 as foreground; need C >= 2"
    assert targets.shape == (N, H, W)

    hw = H * W
    x_itemsize = jnp.dtype(inputs.dtype).itemsize
    t_itemsize = jnp.dtype(targets.dtype).itemsize
    S, tS, n_steps = _choose_tiling(hw, C, x_itemsize, t_itemsize)
    L = _LANES
    pad = S * L - hw

    x = inputs.reshape(N, C, hw)
    t = targets.reshape(N, hw)
    if pad:
        x = jnp.pad(x, ((0, 0), (0, 0), (0, pad)))
        t = jnp.pad(t, ((0, 0), (0, pad)))
    x = x.reshape(N, C, S, L)          # pure reshape/pad, stays in caller dtype
    t = t.reshape(N, S, L)

    apply_ignore = ignore_index not in (None, -100)
    kernel = functools.partial(
        _dice_partial_kernel,
        n_channels=C,
        apply_ignore=apply_ignore,
        ignore_value=float(ignore_index) if apply_ignore else 0.0,
        need_tail_mask=pad > 0,
        valid_size=hw,
        tile_rows=tS,
        lanes=L,
    )

    cost = pl.CostEstimate(
        flops=N * S * L * (2 * C + 8),
        transcendentals=N * S * L * C,         # (C-1) exps + 1 reciprocal
        bytes_accessed=(x.size * x_itemsize + t.size * t_itemsize
                        + N * n_steps * 2 * 4),
    )

    partials = pl.pallas_call(
        kernel,
        out_shape=jax.ShapeDtypeStruct((N, n_steps, 2), jnp.float32),
        grid=(N, n_steps),
        in_specs=[
            pl.BlockSpec((1, C, tS, L), lambda n, s: (n, 0, s, 0)),
            pl.BlockSpec((1, tS, L), lambda n, s: (n, s, 0)),
        ],
        out_specs=pl.BlockSpec((1, 1, 2), lambda n, s: (n, s, 0),
                               memory_space=pltpu.SMEM),
        compiler_params=pltpu.CompilerParams(
            dimension_semantics=("parallel", "parallel")),
        cost_estimate=cost,
    )(x, t)

    num = jnp.sum(partials[..., 0])
    den = jnp.sum(partials[..., 1])
    dice_coef = (2.0 * num + smooth) / (den + smooth)
    loss = 1.0 - dice_coef

    if reduction in ("mean", "none"):
        return loss                    # reference returns the same scalar for both
    elif reduction == "sum":
        return loss * (N * H * W)      # reference: (1 - dice) * inputs_flat.size(0)
    else:
        raise ValueError(f"Unsupported reduction mode: {reduction}")


def _dice_loss_ref(inputs, targets, smooth=1.0, ignore_index=-100):
    p = jax.nn.softmax(inputs.astype(jnp.float32), axis=1)
    t = targets.astype(jnp.float32)
    if ignore_index not in (None, -100):
        mask = (t != ignore_index).astype(jnp.float32)
        p = p * mask[:, None, :, :]
        t = t * mask
    p_fg = p[:, 1, :, :].reshape(-1)
    t = t.reshape(-1)
    inter = jnp.sum(p_fg * t)
    dice = (2.0 * inter + smooth) / (jnp.sum(p_fg) + jnp.sum(t) + smooth)
    return 1.0 - dice


if __name__ == "__main__":
    key = jax.random.PRNGKey(0)
    k1, k2, k3, k4 = jax.random.split(key, 4)

    # Shapes consistent with the module: NCHW logits + NHW labels.
    N, C, H, W = 2, 4, 16, 16
    inputs = jax.random.normal(k1, (N, C, H, W), dtype=jnp.float32)
    targets = (jax.random.uniform(k2, (N, H, W)) > 0.5).astype(jnp.float32)

    # Default path (ignore_index == -100 -> masking branch skipped, as in torch).
    loss = jax.block_until_ready(
        dice_loss(inputs, targets, smooth=1.0, reduction="mean"))
    ref = _dice_loss_ref(inputs, targets, smooth=1.0)
    assert jnp.allclose(loss, ref, atol=1e-3, rtol=1e-3), (loss, ref)

    # ignore_index masking path.
    tgt_ign = targets.at[0, :4, :].set(255.0)
    loss_i = jax.block_until_ready(
        dice_loss(inputs, tgt_ign, smooth=1.0, reduction="mean",
                  ignore_index=255))
    ref_i = _dice_loss_ref(inputs, tgt_ign, smooth=1.0, ignore_index=255)
    assert jnp.allclose(loss_i, ref_i, atol=1e-3, rtol=1e-3), (loss_i, ref_i)

    # Odd spatial size (H*W not a multiple of 128) -> exercises the padded-tail
    # mask and the lane-dense flattened layout.
    Ho, Wo = 15, 9
    inputs_o = jax.random.normal(k3, (N, C, Ho, Wo), dtype=jnp.float32)
    targets_o = (jax.random.uniform(k4, (N, Ho, Wo)) > 0.5).astype(jnp.float32)
    loss_o = jax.block_until_ready(
        dice_loss(inputs_o, targets_o, smooth=1.0, reduction="sum"))
    ref_o = _dice_loss_ref(inputs_o, targets_o, smooth=1.0) * (N * Ho * Wo)
    assert jnp.allclose(loss_o, ref_o, atol=1e-2, rtol=1e-3), (loss_o, ref_o)

    print("KERNEL_OK")
</pallas_src>

<mosaic_0001>
module attributes {stable_mosaic.version = 11 : i64} {
  func.func @_dice_partial_kernel(%arg0: i32, %arg1: i32, %arg2: memref<1x4x8x128xf32, #tpu.memory_space<vmem>>, %arg3: memref<1x8x128xf32, #tpu.memory_space<vmem>>, %arg4: memref<1x1x2xf32, #tpu.memory_space<smem>>) attributes {dimension_semantics = [#tpu.dimension_semantics<parallel>, #tpu.dimension_semantics<parallel>], iteration_bounds = array<i64: 2, 1>, scalar_prefetch = 0 : i64, scratch_operands = 0 : i64, tpu.core_type = #tpu.core_type<tc>, window_params = [{transform_indices = @transform_0, window_bounds = array<i64: 1, 4, 8, 128>}, {transform_indices = @transform_1, window_bounds = array<i64: 1, 8, 128>}, {transform_indices = @transform_2, window_bounds = array<i64: 1, 1, 2>}]} {
    %c0 = arith.constant 0 : index
    %c0_0 = arith.constant 0 : index
    %c0_1 = arith.constant 0 : index
    %0 = vector.load %arg3[%c0, %c0_0, %c0_1] : memref<1x8x128xf32, #tpu.memory_space<vmem>>, vector<1x8x128xf32>
    %1 = vector.shape_cast %0 : vector<1x8x128xf32> to vector<8x128xf32>
    %c0_2 = arith.constant 0 : index
    %c1 = arith.constant 1 : index
    %c0_3 = arith.constant 0 : index
    %c0_4 = arith.constant 0 : index
    %2 = vector.load %arg2[%c0_2, %c1, %c0_3, %c0_4] : memref<1x4x8x128xf32, #tpu.memory_space<vmem>>, vector<1x1x8x128xf32>
    %3 = vector.shape_cast %2 : vector<1x1x8x128xf32> to vector<8x128xf32>
    %cst = arith.constant 1.000000e+00 : f32
    %4 = vector.broadcast %cst : f32 to vector<8x128xf32>
    %c0_5 = arith.constant 0 : index
    %c0_6 = arith.constant 0 : index
    %c0_7 = arith.constant 0 : index
    %c0_8 = arith.constant 0 : index
    %5 = vector.load %arg2[%c0_5, %c0_6, %c0_7, %c0_8] : memref<1x4x8x128xf32, #tpu.memory_space<vmem>>, vector<1x1x8x128xf32>
    %6 = vector.shape_cast %5 : vector<1x1x8x128xf32> to vector<8x128xf32>
    %7 = arith.subf %6, %3 : vector<8x128xf32>
    %cst_9 = arith.constant 8.000000e+01 : f32
    %8 = vector.broadcast %cst_9 : f32 to vector<8x128xf32>
    %9 = arith.minimumf %7, %8 : vector<8x128xf32>
    %10 = math.exp %9 : vector<8x128xf32>
    %11 = arith.addf %4, %10 : vector<8x128xf32>
    %c0_10 = arith.constant 0 : index
    %c2 = arith.constant 2 : index
    %c0_11 = arith.constant 0 : index
    %c0_12 = arith.constant 0 : index
    %12 = vector.load %arg2[%c0_10, %c2, %c0_11, %c0_12] : memref<1x4x8x128xf32, #tpu.memory_space<vmem>>, vector<1x1x8x128xf32>
    %13 = vector.shape_cast %12 : vector<1x1x8x128xf32> to vector<8x128xf32>
    %14 = arith.subf %13, %3 : vector<8x128xf32>
    %cst_13 = arith.constant 8.000000e+01 : f32
    %15 = vector.broadcast %cst_13 : f32 to vector<8x128xf32>
    %16 = arith.minimumf %14, %15 : vector<8x128xf32>
    %17 = math.exp %16 : vector<8x128xf32>
    %18 = arith.addf %11, %17 : vector<8x128xf32>
    %c0_14 = arith.constant 0 : index
    %c3 = arith.constant 3 : index
    %c0_15 = arith.constant 0 : index
    %c0_16 = arith.constant 0 : index
    %19 = vector.load %arg2[%c0_14, %c3, %c0_15, %c0_16] : memref<1x4x8x128xf32, #tpu.memory_space<vmem>>, vector<1x1x8x128xf32>
    %20 = vector.shape_cast %19 : vector<1x1x8x128xf32> to vector<8x128xf32>
    %21 = arith.subf %20, %3 : vector<8x128xf32>
    %cst_17 = arith.constant 8.000000e+01 : f32
    %22 = vector.broadcast %cst_17 : f32 to vector<8x128xf32>
    %23 = arith.minimumf %21, %22 : vector<8x128xf32>
    %24 = math.exp %23 : vector<8x128xf32>
    %25 = arith.addf %18, %24 : vector<8x128xf32>
    %26 = tpu.reciprocal %25 : vector<8x128xf32> -> vector<8x128xf32>
    %27 = tpu.iota {dimensions = array<i32: 0>} : vector<8x128xi32>
    %28 = tpu.iota {dimensions = array<i32: 1>} : vector<8x128xi32>
    %c1024_i32 = arith.constant 1024 : i32
    %29 = arith.muli %arg1, %c1024_i32 : i32
    %c128_i32 = arith.constant 128 : i32
    %30 = vector.broadcast %c128_i32 : i32 to vector<8x128xi32>
    %31 = arith.muli %27, %30 : vector<8x128xi32>
    %32 = vector.broadcast %29 : i32 to vector<8x128xi32>
    %33 = arith.addi %32, %31 : vector<8x128xi32>
    %34 = arith.addi %33, %28 : vector<8x128xi32>
    %c256_i32 = arith.constant 256 : i32
    %35 = vector.broadcast %c256_i32 : i32 to vector<8x128xi32>
    %36 = arith.cmpi slt, %34, %35 : vector<8x128xi32>
    %37 = arith.extui %36 : vector<8x128xi1> to vector<8x128xi32>
    %38 = arith.sitofp %37 : vector<8x128xi32> to vector<8x128xf32>
    %39 = arith.mulf %26, %38 : vector<8x128xf32>
    %40 = arith.mulf %1, %38 : vector<8x128xf32>
    %41 = arith.mulf %39, %40 : vector<8x128xf32>
    %42 = vector.shape_cast %41 : vector<8x128xf32> to vector<1x8x128xf32>
    %cst_18 = arith.constant dense<0.000000e+00> : vector<1xf32>
    %43 = vector.multi_reduction <add>, %42, %cst_18 [1, 2] : vector<1x8x128xf32> to vector<1xf32>
    %44 = vector.shape_cast %43 : vector<1xf32> to vector<1x1x1xf32>
    %45 = vector.extract %44[0, 0, 0] : f32 from vector<1x1x1xf32>
    %c0_19 = arith.constant 0 : index
    %c0_20 = arith.constant 0 : index
    %c0_21 = arith.constant 0 : index
    %46 = memref.load %arg4[%c0_19, %c0_20, %c0_21] : memref<1x1x2xf32, #tpu.memory_space<smem>>
    memref.store %45, %arg4[%c0_19, %c0_20, %c0_21] : memref<1x1x2xf32, #tpu.memory_space<smem>>
    %47 = vector.shape_cast %39 : vector<8x128xf32> to vector<1x8x128xf32>
    %cst_22 = arith.constant dense<0.000000e+00> : vector<1xf32>
    %48 = vector.multi_reduction <add>, %47, %cst_22 [1, 2] : vector<1x8x128xf32> to vector<1xf32>
    %49 = vector.shape_cast %48 : vector<1xf32> to vector<1x1x1xf32>
    %50 = vector.extract %49[0, 0, 0] : f32 from vector<1x1x1xf32>
    %51 = vector.shape_cast %40 : vector<8x128xf32> to vector<1x8x128xf32>
    %cst_23 = arith.constant dense<0.000000e+00> : vector<1xf32>
    %52 = vector.multi_reduction <add>, %51, %cst_23 [1, 2] : vector<1x8x128xf32> to vector<1xf32>
    %53 = vector.shape_cast %52 : vector<1xf32> to vector<1x1x1xf32>
    %54 = vector.extract %53[0, 0, 0] : f32 from vector<1x1x1xf32>
    %55 = arith.addf %50, %54 : f32
    %c0_24 = arith.constant 0 : index
    %c0_25 = arith.constant 0 : index
    %c1_26 = arith.constant 1 : index
    %56 = memref.load %arg4[%c0_24, %c0_25, %c1_26] : memref<1x1x2xf32, #tpu.memory_space<smem>>
    memref.store %55, %arg4[%c0_24, %c0_25, %c1_26] : memref<1x1x2xf32, #tpu.memory_space<smem>>
    return
  }
  func.func @transform_0(%arg0: i32, %arg1: i32) -> (i32, i32, i32, i32) {
    %c0_i32 = arith.constant 0 : i32
    %c0_i32_0 = arith.constant 0 : i32
    %c0_i32_1 = arith.constant 0 : i32
    return %arg0, %c0_i32, %arg1, %c0_i32_0 : i32, i32, i32, i32
  }
  func.func @transform_1(%arg0: i32, %arg1: i32) -> (i32, i32, i32) {
    %c0_i32 = arith.constant 0 : i32
    %c0_i32_0 = arith.constant 0 : i32
    return %arg0, %arg1, %c0_i32 : i32, i32, i32
  }
  func.func @transform_2(%arg0: i32, %arg1: i32) -> (i32, i32, i32) {
    %c0_i32 = arith.constant 0 : i32
    %c0_i32_0 = arith.constant 0 : i32
    return %arg0, %arg1, %c0_i32 : i32, i32, i32
  }
}

</mosaic_0001>

<llo_original>
// kernel: tpu_custom_call.1
$region0: #{tpu_custom_call.1}
  #allocation0 [shape = 'u32[]', space=smem, size = 0x4, offset = 0x4, fixed_abs, tag = 'smem constant byte address 0x4 - core index']
  #allocation1 [shape = 'u32[144,128]{1,0:T(1,128)}', space=vmem, size = 0x12000, scoped, tag = 'internal scratch']
  %s0 = inlined_call_operand.hbm [shape: f32[2,4,8,128], index: 0, kind: input, shape index: {}]
  %s1 = inlined_call_operand.hbm [shape: f32[2,8,128], index: 1, kind: input, shape index: {}]
  %s2 = inlined_call_operand.hbm [shape: f32[2,1,2], index: 2, kind: output, shape index: {}]
  %s3 = sld [smem:[#allocation0]]
  $region49: #{tpu_custom_call.1} parent=0
    _
  %s5 = ssub.s32 1, %s3
  %s6 = scalar_select 0, %s5, %s3
  $region1: #{tpu_custom_call.1} parent=0
    #allocation2 [shape = 'u8[32768]{0}', space=vmem, size = 0x8000, scoped, tag = 'input window, operand 0']
    #allocation3 [shape = 's32[2]{0}', space=sflag, size = 0x8, scoped, tag = 'scoped memory for tpu_custom_call.1']
    #allocation4 [shape = 's32[2]{0}', space=sflag, size = 0x8, scoped, tag = 'scoped memory for tpu_custom_call.1']
    #allocation5 [shape = 'u8[8192]{0}', space=vmem, size = 0x2000, scoped, tag = 'input window, operand 1']
    #allocation6 [shape = 's32[2]{0}', space=sflag, size = 0x8, scoped, tag = 'scoped memory for tpu_custom_call.1']
    #allocation7 [shape = 'u8[1024]{0}', space=smem, size = 0x400, scoped, tag = 'output window, operand 0']
    %7 = vsyncpa [#allocation3], 0
    %s8 = scalar_lea.sflag [#allocation3], 1
    %9 = vsyncpa %s8, 0
    %10 = vsyncpa [#allocation6], 0
    %s11 = scalar_lea.sflag [#allocation6], 1
    %12 = vsyncpa %s11, 0
    %13 = vsyncpa [#allocation4], 0
    %s14 = scalar_lea.sflag [#allocation4], 1
    %15 = vsyncpa %s14, 0
    loop: start=0, step=1, limit=4
    $region2: #{tpu_custom_call.1} parent=1 // loop_pre_header
      _
    $region3: #{tpu_custom_call.1} parent=1 // loop_header
      %s17 = sphi 0, %s21
      %p18 = scmp.ge.s32.totalorder %s17, 4
      %s24 = sphi 0, %s36
      %s25 = sphi 0, %s32
      %s26 = sphi 0, %s24
      %s27 = sphi 0, %s25
      %s28 = sphi 0, %s26
      %s29 = sphi 0, %s27
      %s41 = sphi 0, %s43
      %s44 = sphi 0, %s41
      %s45 = sphi 0, %s44
      %s61 = sphi 0, %s45
      %s69 = sphi 0, %s71
      %s72 = sphi 0, %s69
      %s73 = sphi 0, %s72
      %s89 = sphi 0, %s73
      %s97 = sphi 0, %s99
      %s100 = sphi 0, %s97
      %s101 = sphi 0, %s100
      %s117 = sphi 0, %s101
    $region4: #{tpu_custom_call.1} parent=1 // loop_header_branch
      %20 = sbr.rel (%p18) target = $region8
    $region5: #{tpu_custom_call.1} parent=1 // loop_body
      %s22 = ssub.s32 %s17, 1
      %s23 = ssub.s32 %s17, 2
      %s30 = sadd.s32 1, %s25
      %p31 = scmp.ge.s32.totalorder %s30, 1
      %s32 = scalar_select %p31, 0, %s30
      %s33 = sadd.s32 1, %s24
      %s34 = scalar_select %p31, %s33, %s24
      %p35 = scmp.ge.s32.totalorder %s34, 2
      %s36 = scalar_select %p35, 0, %s34
      %s37 = ssub.s32 %s24, %s36
      %s38 = ssub.s32 %s25, %s32
      %s39 = sor.u32 %s37, %s38
      %p40 = scmp.eq.s32.totalorder %s39, 0
      %s42 = sadd.s32 %s41, 1
      %s43 = scalar_select %p40, %s41, %s42
      %p46 = pneg %p40
      %p47 = scmp.eq.s32.totalorder %s17, 1
      %p48 = por %p46, %p47
      %p49 = scmp.ne.s32.totalorder %s41, %s44
      %p50 = scmp.eq.s32.totalorder %s17, 0
      %p51 = por %p49, %p50
      %p52 = scmp.ne.s32.totalorder %s41, %s44
      %p53 = scmp.eq.s32.totalorder %s22, 1
      %p54 = por %p52, %p53
      %p55 = scmp.ne.s32.totalorder %s44, %s45
      %p56 = scmp.eq.s32.totalorder %s22, 0
      %p57 = por %p55, %p56
      %p58 = scmp.ne.s32.totalorder %s44, %s45
      %p59 = scmp.eq.s32.totalorder %s23, 1
      %p60 = por %p58, %p59
      %p62 = scmp.ne.s32.totalorder %s45, %s61
      %p63 = scmp.eq.s32.totalorder %s23, 0
      %p64 = por %p62, %p63
      %s65 = ssub.s32 %s24, %s36
      %s66 = ssub.s32 %s25, %s32
      %s67 = sor.u32 %s65, %s66
      %p68 = scmp.eq.s32.totalorder %s67, 0
      %s70 = sadd.s32 %s69, 1
      %s71 = scalar_select %p68, %s69, %s70
      %p74 = pneg %p68
      %p75 = scmp.eq.s32.totalorder %s17, 1
      %p76 = por %p74, %p75
      %p77 = scmp.ne.s32.totalorder %s69, %s72
      %p78 = scmp.eq.s32.totalorder %s17, 0
      %p79 = por %p77, %p78
      %p80 = scmp.ne.s32.totalorder %s69, %s72
      %p81 = scmp.eq.s32.totalorder %s22, 1
      %p82 = por %p80, %p81
      %p83 = scmp.ne.s32.totalorder %s72, %s73
      %p84 = scmp.eq.s32.totalorder %s22, 0
      %p85 = por %p83, %p84
      %p86 = scmp.ne.s32.totalorder %s72, %s73
      %p87 = scmp.eq.s32.totalorder %s23, 1
      %p88 = por %p86, %p87
      %p90 = scmp.ne.s32.totalorder %s73, %s89
      %p91 = scmp.eq.s32.totalorder %s23, 0
      %p92 = por %p90, %p91
      %s93 = ssub.s32 %s24, %s36
      %s94 = ssub.s32 %s25, %s32
      %s95 = sor.u32 %s93, %s94
      %p96 = scmp.eq.s32.totalorder %s95, 0
      %s98 = sadd.s32 %s97, 1
      %s99 = scalar_select %p96, %s97, %s98
      %p102 = pneg %p96
      %p103 = scmp.eq.s32.totalorder %s17, 1
      %p104 = por %p102, %p103
      %p105 = scmp.ne.s32.totalorder %s97, %s100
      %p106 = scmp.eq.s32.totalorder %s17, 0
      %p107 = por %p105, %p106
      %p108 = scmp.ne.s32.totalorder %s97, %s100
      %p109 = scmp.eq.s32.totalorder %s22, 1
      %p110 = por %p108, %p109
      %p111 = scmp.ne.s32.totalorder %s100, %s101
      %p112 = scmp.eq.s32.totalorder %s22, 0
      %p113 = por %p111, %p112
      %p114 = scmp.ne.s32.totalorder %s100, %s101
      %p115 = scmp.eq.s32.totalorder %s23, 1
      %p116 = por %p114, %p115
      %p118 = scmp.ne.s32.totalorder %s101, %s117
      %p119 = scmp.eq.s32.totalorder %s23, 0
      %p120 = por %p118, %p119
      %p121 = scmp.le.s32.totalorder 1, %s17
      %p122 = scmp.lt.s32.totalorder %s17, 3
      %p123 = pnand %p121, %p122
      %p124 = pneg %p123
      // Predicated region
      $region9: #{tpu_custom_call.1} parent=5 // pred_check
        _
      $region10: #{tpu_custom_call.1} parent=5 // pred_check_branch
        %126 = sbr.rel (%p123) target = $region12
      $region11: #{tpu_custom_call.1} parent=5 // pred_region
        %s127 = ssub.s32 %s17, 1
      $region12: #{tpu_custom_call.1} parent=5 // pred_fallthru
        _
      %p128 = scmp.lt.s32.totalorder %s17, 2
      // Predicated region
      $region13: #{tpu_custom_call.1} parent=5 // pred_check
        %p129 = pneg %p128
      $region14: #{tpu_custom_call.1} parent=5 // pred_check_branch
        %131 = sbr.rel (%p129) target = $region16
      $region15: #{tpu_custom_call.1} parent=5 // pred_region
        // Predicated region
        $region17: #{tpu_custom_call.1} parent=15 // pred_check
          %p132 = pneg %p51
        $region18: #{tpu_custom_call.1} parent=15 // pred_check_branch
          %134 = sbr.rel (%p132) target = $region20
        $region19: #{tpu_custom_call.1} parent=15 // pred_region
          %s135 = sand.u32 %s41, 1
          %s136 = scalar_lea.sflag [#allocation3], %s135
          %s137 = sand.u32 %s41, 1
          %s138 = smul.addr %s137, 32
          %s139 = scalar_lea.vmem [#allocation2], %s138
          %s141 = ssub.s32 512, 512
          %142 = vsyncadd %s136, %s141
          %s143 = smul.addr %s24, 4
          %s144 = sadd.s32 %s25, %s143
          %s145 = smul.addr %s144, 128
          %s146 = scalar_lea.hbm %s0, %s145
          %s147 = sshll.u32 %s139, 4
          %s148 = int_to_ptr.vmem [resolvable:$true] %s147
          %153 = dma.hbm_to_vmem [thread:$0]  %s146, 512, %s148, %s136, 128, 128, 8
        $region20: #{tpu_custom_call.1} parent=15 // pred_fallthru
          _
        // Predicated region
        $region21: #{tpu_custom_call.1} parent=15 // pred_check
          %p154 = pneg %p79
        $region22: #{tpu_custom_call.1} parent=15 // pred_check_branch
          %156 = sbr.rel (%p154) target = $region24
        $region23: #{tpu_custom_call.1} parent=15 // pred_region
          %s157 = sand.u32 %s69, 1
          %s158 = scalar_lea.sflag [#allocation6], %s157
          %s159 = sand.u32 %s69, 1
          %s160 = smul.addr %s159, 8
          %s161 = scalar_lea.vmem [#allocation5], %s160
          %s163 = ssub.s32 128, 128
          %164 = vsyncadd %s158, %s163
          %s165 = sadd.s32 %s25, %s24
          %s166 = smul.addr %s165, 128
          %s167 = scalar_lea.hbm %s1, %s166
          %s169 = sshll.u32 %s161, 4
          %s170 = int_to_ptr.vmem [resolvable:$true] %s169
          %172 = dma.hbm_to_vmem [thread:$0]  %s167, 128, %s170, %s158
        $region24: #{tpu_custom_call.1} parent=15 // pred_fallthru
          _
      $region16: #{tpu_custom_call.1} parent=5 // pred_fallthru
        _
      %p173 = scmp.le.s32.totalorder 1, %s17
      %p174 = scmp.lt.s32.totalorder %s17, 3
      %p175 = pnand %p173, %p174
      %p176 = pneg %p175
      // Predicated region
      $region25: #{tpu_custom_call.1} parent=5 // pred_check
        _
      $region26: #{tpu_custom_call.1} parent=5 // pred_check_branch
        %178 = sbr.rel (%p175) target = $region28
      $region27: #{tpu_custom_call.1} parent=5 // pred_region
        %s179 = ssub.s32 %s17, 1
        %s180 = sand.u32 %s44, 1
        %s181 = scalar_lea.sflag [#allocation3], %s180
        %s182 = sand.u32 %s44, 1
        %s183 = smul.addr %s182, 32
        %s184 = scalar_lea.vmem [#allocation2], %s183
        // Predicated region
        $region29: #{tpu_custom_call.1} parent=27 // pred_check
          %p185 = pneg %p57
        $region30: #{tpu_custom_call.1} parent=27 // pred_check_branch
          %187 = sbr.rel (%p185) target = $region32
        $region31: #{tpu_custom_call.1} parent=27 // pred_region
          %188 = dma.done %s181, 512
        $region32: #{tpu_custom_call.1} parent=27 // pred_fallthru
          _
        %s189 = sand.u32 %s72, 1
        %s190 = scalar_lea.sflag [#allocation6], %s189
        %s191 = sand.u32 %s72, 1
        %s192 = smul.addr %s191, 8
        %s193 = scalar_lea.vmem [#allocation5], %s192
        // Predicated region
        $region33: #{tpu_custom_call.1} parent=27 // pred_check
          %p194 = pneg %p85
        $region34: #{tpu_custom_call.1} parent=27 // pred_check_branch
          %196 = sbr.rel (%p194) target = $region36
        $region35: #{tpu_custom_call.1} parent=27 // pred_region
          %197 = dma.done %s190, 128
        $region36: #{tpu_custom_call.1} parent=27 // pred_fallthru
          _
        %s198 = sand.u32 %s44, 1
        %s199 = scalar_lea.sflag [#allocation3], %s198
        %s200 = sand.u32 %s44, 1
        %s201 = smul.addr %s200, 32
        %s202 = scalar_lea.vmem [#allocation2], %s201
        %p203 = pneg %p57
        %p204 = pneg %p54
        %s205 = sand.u32 %s72, 1
        %s206 = scalar_lea.sflag [#allocation6], %s205
        %s207 = sand.u32 %s72, 1
        %s208 = smul.addr %s207, 8
        %s209 = scalar_lea.vmem [#allocation5], %s208
        %p210 = pneg %p85
        %p211 = pneg %p82
        %p212 = pneg %p113
        %p213 = pneg %p110
        %s214 = sand.u32 %s100, 1
        %s215 = scalar_lea.sflag [#allocation4], %s214
        %s216 = sand.u32 %s100, 1
        %s217 = smul.addr %s216, 128
        %s218 = scalar_lea.smem [#allocation7], %s217
        %v219 = vld [vmem:[%s193] sm:$0xff]
        %s220 = scalar_lea.vmem %s184, 8 [#allocation2]
        %v221 = vld [vmem:[%s220] sm:$0xff]
        %v222 = vld [vmem:[%s184] sm:$0xff]
        %v223 = vsub.f32 %v222, %v221
        %v224 = vmin.f32 %v223, 80.0
        %v225 = vmul.f32 %v224, 1.442695
        %v226 = vpow.pop %v225
        %v227 = vadd.f32 %v226, 1.0
        %s228 = scalar_lea.vmem %s184, 16 [#allocation2]
        %v229 = vld [vmem:[%s228] sm:$0xff]
        %v230 = vsub.f32 %v229, %v221
        %v231 = vmin.f32 %v230, 80.0
        %v232 = vmul.f32 %v231, 1.442695
        %v233 = vpow.pop %v232
        %v234 = vadd.f32 %v227, %v233
        %s235 = scalar_lea.vmem %s184, 24 [#allocation2]
        %v236 = vld [vmem:[%s235] sm:$0xff]
        %v237 = vsub.f32 %v236, %v221
        %v238 = vmin.f32 %v237, 80.0
        %v239 = vmul.f32 %v238, 1.442695
        %v240 = vpow.pop %v239
        %v241 = vadd.f32 %v234, %v240
        %v242 = vrcp.pop %v241
        %v243 = vlaneseq
        %v244 = vshrl.u32 %v243, 7
        %v245 = vlaneseq
        %v246 = vand.u32 %v245, 127
        %s247 = smul.u32 %s27, 1024
        %v248 = vmul.u32 %v244, 128
        %v249 = vstv %s247
        %v250 = vadd.s32 %v249, %v248
        %v251 = vadd.s32 %v250, %v246
        %vm252 = vcmp.lt.s32.totalorder %v251, 256
        %v253 = vsel %vm252, 1, 0
        %v254 = vcvt.s32.f32 %v253
        %v255 = vmul.f32 %v242, %v254
        %v256 = vmul.f32 %v219, %v254
        %v257 = vmul.f32 %v255, %v256
        %258 = vadd.xlane.f32.xlu0 %v257
        %v259 = vpop.xlane.xlu0 %258
        %v260 = vrot.slane %v259, 4
        %v261 = vadd.f32 %v259, %v260
        %v262 = vrot.slane %v261, 2
        %v263 = vadd.f32 %v261, %v262
        %v264 = vrot.slane %v263, 1
        %v265 = vadd.f32 %v263, %v264
        %s266 = vtos %v265
        %s267 = scalar_lea.smem %s218, 0 [#allocation7]
        %268 = sst [smem:[%s267]] %s266
        %269 = vadd.xlane.f32.xlu0 %v255
        %v270 = vpop.xlane.xlu0 %269
        %v271 = vrot.slane %v270, 4
        %v272 = vadd.f32 %v270, %v271
        %v273 = vrot.slane %v272, 2
        %v274 = vadd.f32 %v272, %v273
        %v275 = vrot.slane %v274, 1
        %v276 = vadd.f32 %v274, %v275
        %s277 = vtos %v276
        %278 = vadd.xlane.f32.xlu0 %v256
        %v279 = vpop.xlane.xlu0 %278
        %v280 = vrot.slane %v279, 4
        %v281 = vadd.f32 %v279, %v280
        %v282 = vrot.slane %v281, 2
        %v283 = vadd.f32 %v281, %v282
        %v284 = vrot.slane %v283, 1
        %v285 = vadd.f32 %v283, %v284
        %s286 = vtos %v285
        %s287 = sadd.f32 %s277, %s286
        %s288 = scalar_lea.smem %s218, 1 [#allocation7]
        %289 = sst [smem:[%s288]] %s287
        %s290 = sand.u32 %s100, 1
        %s291 = scalar_lea.sflag [#allocation4], %s290
        %s292 = sand.u32 %s100, 1
        %s293 = smul.addr %s292, 128
        %s294 = scalar_lea.smem [#allocation7], %s293
        // Predicated region
        $region37: #{tpu_custom_call.1} parent=27 // pred_check
          %p295 = pneg %p110
        $region38: #{tpu_custom_call.1} parent=27 // pred_check_branch
          %297 = sbr.rel (%p295) target = $region40
        $region39: #{tpu_custom_call.1} parent=27 // pred_region
          %s299 = ssub.s32 16, 16
          %300 = vsyncadd %s291, %s299
          %s301 = sadd.s32 %s27, %s26
          %s302 = smul.addr %s301, 16
          %s303 = scalar_lea.hbm %s2, %s302
          %306 = dma.smem_to_hbm %s294, 16, %s303, %s291
        $region40: #{tpu_custom_call.1} parent=27 // pred_fallthru
          _
      $region28: #{tpu_custom_call.1} parent=5 // pred_fallthru
        _
      %p307 = scmp.le.s32.totalorder 2, %s17
      // Predicated region
      $region41: #{tpu_custom_call.1} parent=5 // pred_check
        %p308 = pneg %p307
      $region42: #{tpu_custom_call.1} parent=5 // pred_check_branch
        %310 = sbr.rel (%p308) target = $region44
      $region43: #{tpu_custom_call.1} parent=5 // pred_region
        %s311 = ssub.s32 %s17, 2
        // Predicated region
        $region45: #{tpu_custom_call.1} parent=43 // pred_check
          %p312 = pneg %p116
        $region46: #{tpu_custom_call.1} parent=43 // pred_check_branch
          %314 = sbr.rel (%p312) target = $region48
        $region47: #{tpu_custom_call.1} parent=43 // pred_region
          %s315 = sand.u32 %s101, 1
          %s316 = scalar_lea.sflag [#allocation4], %s315
          %s317 = sand.u32 %s101, 1
          %s318 = smul.addr %s317, 128
          %s319 = scalar_lea.smem [#allocation7], %s318
          %320 = dma.done %s316, 16
        $region48: #{tpu_custom_call.1} parent=43 // pred_fallthru
          _
        %321 = sfence
      $region44: #{tpu_custom_call.1} parent=5 // pred_fallthru
        _
    $region6: #{tpu_custom_call.1} parent=1 // loop_footer
      %s21 = sadd.s32 1, %s17
    $region7: #{tpu_custom_call.1} parent=1 // loop_footer_branch
      %16 = sbr.rel target = $region3
    $region8: #{tpu_custom_call.1} parent=1 // loop_exit
      _
    %322 = vsyncpa [#allocation3], 1
    %s323 = scalar_lea.sflag [#allocation3], 1
    %324 = vsyncpa %s323, 1
    %325 = vsyncpa [#allocation6], 1
    %s326 = scalar_lea.sflag [#allocation6], 1
    %327 = vsyncpa %s326, 1
    %328 = vsyncpa [#allocation4], 1
    %s329 = scalar_lea.sflag [#allocation4], 1
    %330 = vsyncpa %s329, 1

</llo_original>
